<compile_context>
chip_gen: v6e
topology: v6e:2x2x1
jax: 0.10.0
libtpu: 0.0.40
codegen_flags: <defaults>
</compile_context>

<pallas_src>
import functools

import jax
import jax.numpy as jnp
from jax.experimental import pallas as pl
from jax.experimental.pallas import tpu as pltpu


def _conv_kernel(x_ref, w_ref, b_ref, o_ref, lhs_ref, *, KH, KW, Wo, pad):
    # x_ref:   (bb, C, L)          row-padded, flattened, end-padded activations
    # w_ref:   (O, KH*KW*C)        weights, columns ordered (kh, kw, c)
    # b_ref:   (O, 1)              bias
    # o_ref:   (bb, O, Ho*Wo)      lane-dense output (Ho*Wo on the lane axis)
    # lhs_ref: (KH*KW*C, bb*Ho*Wo) VMEM scratch: transposed im2col matrix
    bb, C, _ = x_ref.shape
    _, O, HW = o_ref.shape

    # Output-column index j for every flattened output position (lane axis).
    j_idx = jax.lax.broadcasted_iota(jnp.int32, (1, HW), 1) % Wo

    # Taps with kw != pad read wrapped-around neighbours at the left/right
    # image borders (width padding is emulated in flat space) -> zero them.
    valid_by_kw = {}
    for kw in range(KW):
        lo, hi = pad - kw, Wo + pad - kw
        if lo > 0 or hi < Wo:
            valid_by_kw[kw] = (j_idx >= lo) & (j_idx < hi)

    # Build the transposed im2col matrix with constant-offset lane slices.
    for b in range(bb):                              # static unroll, bb is tiny
        for kh in range(KH):
            for kw in range(KW):
                t = kh * KW + kw
                off = kh * Wo + kw                   # constant flat shift per tap
                patch = x_ref[b, :, off:off + HW]    # (C, HW) contiguous slice
                valid = valid_by_kw.get(kw)
                if valid is not None:
                    patch = jnp.where(valid, patch, 0.0)
                lhs_ref[t * C:(t + 1) * C, b * HW:(b + 1) * HW] = patch

    # One MXU matmul; result is already lane-dense: (O, bb*HW). Bias fused in.
    acc = jnp.dot(w_ref[...], lhs_ref[...], preferred_element_type=jnp.float32)
    acc = acc + b_ref[...]

    for b in range(bb):
        o_ref[b] = acc[:, b * HW:(b + 1) * HW].astype(o_ref.dtype)


def _pick_num_blocks(N, bytes_per_image):
    """Grid steps over the batch: 2 parallel steps on dual-TC chips (v7x),
    else fold the whole batch into one step (avoids ~0.35us/step overhead)."""
    try:
        kind = jax.devices()[0].device_kind.lower()
    except Exception:
        kind = ""
    dual_core = ("v7" in kind) or ("7x" in kind)
    want = 2 if (dual_core and N >= 2) else 1
    vmem_budget = 4 << 20  # keep each (double-buffered) input block modest
    for nb in range(1, N + 1):
        if N % nb:
            continue
        if nb >= want and (N // nb) * bytes_per_image <= vmem_budget:
            return nb
    return N


def conv2d_pallas(x_nchw, weight_oihw, bias_o, padding=1):
    """Conv2d with stride 1 and symmetric `padding`, matching nn.Conv2d."""
    N, C, H, W = x_nchw.shape
    O, _, KH, KW = weight_oihw.shape
    Ho = H + 2 * padding - KH + 1
    Wo = W + 2 * padding - KW + 1
    # Flat-shift im2col assumes 'same' width (true for kernel=3, padding=1).
    # TODO(synk): generalize the flat-shift trick to Wo != W convolutions.
    assert Wo == W, "kernel assumes 2*padding == kernel_size - 1 (same-width conv)"

    Hp = H + 2 * padding
    head = padding
    tail = max(KW - 1 - padding, 0)
    L = Hp * W + head + tail
    HW = Ho * Wo

    # Activation glue (stays NCHW, no transposes): pad rows, flatten (free),
    # pad the flat ends so every tap is a constant in-bounds shift.
    x_rp = jnp.pad(x_nchw, ((0, 0), (0, 0), (padding, padding), (0, 0)))
    x_flat = jnp.pad(x_rp.reshape(N, C, Hp * W), ((0, 0), (0, 0), (head, tail)))

    # Tiny weight/bias reshuffles: columns ordered (kh, kw, c).
    w2d = jnp.transpose(weight_oihw, (0, 2, 3, 1)).reshape(O, KH * KW * C)
    b2d = bias_o.reshape(O, 1)

    nb = _pick_num_blocks(N, C * L * x_nchw.dtype.itemsize)
    bb = N // nb

    kernel = functools.partial(_conv_kernel, KH=KH, KW=KW, Wo=Wo, pad=padding)
    out = pl.pallas_call(
        kernel,
        out_shape=jax.ShapeDtypeStruct((N, O, HW), x_nchw.dtype),
        grid=(nb,),
        in_specs=[
            pl.BlockSpec((bb, C, L), lambda n: (n, 0, 0)),
            pl.BlockSpec((O, KH * KW * C), lambda n: (0, 0)),
            pl.BlockSpec((O, 1), lambda n: (0, 0)),
        ],
        out_specs=pl.BlockSpec((bb, O, HW), lambda n: (n, 0, 0)),
        scratch_shapes=[pltpu.VMEM((KH * KW * C, bb * HW), jnp.float32)],
        compiler_params=pltpu.CompilerParams(
            dimension_semantics=("parallel",)),
    )(x_flat, w2d, b2d)

    # Free, contiguous reshape back to NCHW (no transpose / extra HBM pass).
    return out.reshape(N, O, Ho, Wo)


if __name__ == "__main__":
    # Shapes consistent with the module: in_channels=4, out_channels=8,
    # kernel_size=3, padding=1, input (2, 4, 16, 16) NCHW.
    N, C, H, W = 2, 4, 16, 16
    O, K = 8, 3

    key = jax.random.PRNGKey(0)
    kx, kw, kb = jax.random.split(key, 3)

    x = jax.random.normal(kx, (N, C, H, W), dtype=jnp.float32)
    # Deterministic init mimicking nn.Conv2d's uniform(-bound, bound), bound = 1/sqrt(C*K*K).
    bound = 1.0 / jnp.sqrt(jnp.array(C * K * K, jnp.float32))
    weight = jax.random.uniform(kw, (O, C, K, K), jnp.float32, -bound, bound)
    bias = jax.random.uniform(kb, (O,), jnp.float32, -bound, bound)

    out = conv2d_pallas(x, weight, bias, padding=1)
    out = jax.block_until_ready(out)
    assert out.shape == (N, O, H, W), out.shape

    # Sanity check against XLA's conv (same semantics as nn.Conv2d forward).
    ref = jax.lax.conv_general_dilated(
        x, weight, window_strides=(1, 1), padding=((1, 1), (1, 1)),
        dimension_numbers=("NCHW", "OIHW", "NCHW"),
        precision=jax.lax.Precision.HIGHEST) + bias[None, :, None, None]
    assert jnp.allclose(out, ref, atol=1e-4, rtol=1e-4), \
        float(jnp.max(jnp.abs(out - ref)))

    print("KERNEL_OK")
</pallas_src>

<mosaic_0001>
module attributes {stable_mosaic.version = 11 : i64} {
  func.func @_conv_kernel(%arg0: i32, %arg1: memref<2x4x290xf32, #tpu.memory_space<vmem>>, %arg2: memref<8x36xf32, #tpu.memory_space<vmem>>, %arg3: memref<8x1xf32, #tpu.memory_space<vmem>>, %arg4: memref<2x8x256xf32, #tpu.memory_space<vmem>>, %arg5: memref<36x512xf32, #tpu.memory_space<vmem>>) attributes {dimension_semantics = [#tpu.dimension_semantics<parallel>], iteration_bounds = array<i64: 1>, scalar_prefetch = 0 : i64, scratch_operands = 1 : i64, tpu.core_type = #tpu.core_type<tc>, window_params = [{transform_indices = @transform_0, window_bounds = array<i64: 2, 4, 290>}, {pipeline_mode = #tpu.pipeline_mode<synchronous>, transform_indices = @transform_1, window_bounds = array<i64: 8, 36>}, {pipeline_mode = #tpu.pipeline_mode<synchronous>, transform_indices = @transform_2, window_bounds = array<i64: 8, 1>}, {transform_indices = @transform_3, window_bounds = array<i64: 2, 8, 256>}]} {
    %0 = tpu.iota {dimensions = array<i32: 1>} : vector<1x256xi32>
    %c16_i32 = arith.constant 16 : i32
    %c0_i32 = arith.constant 0 : i32
    %1 = arith.cmpi eq, %c16_i32, %c0_i32 : i32
    %c1_i32 = arith.constant 1 : i32
    %2 = arith.select %1, %c1_i32, %c16_i32 : i32
    %3 = vector.broadcast %2 : i32 to vector<1x256xi32>
    %4 = arith.remsi %0, %3 : vector<1x256xi32>
    %c0_i32_0 = arith.constant 0 : i32
    %5 = vector.broadcast %c0_i32_0 : i32 to vector<1x256xi32>
    %6 = arith.cmpi ne, %4, %5 : vector<1x256xi32>
    %c0_i32_1 = arith.constant 0 : i32
    %7 = vector.broadcast %c0_i32_1 : i32 to vector<1x256xi32>
    %8 = arith.cmpi slt, %4, %7 : vector<1x256xi32>
    %c0_i32_2 = arith.constant 0 : i32
    %9 = arith.cmpi slt, %2, %c0_i32_2 : i32
    %10 = vector.broadcast %9 : i1 to vector<1x256xi1>
    %11 = vector.broadcast %10 : vector<1x256xi1> to vector<1x256xi1>
    %12 = arith.xori %8, %11 : vector<1x256xi1>
    %13 = arith.andi %12, %6 : vector<1x256xi1>
    %14 = vector.broadcast %2 : i32 to vector<1x256xi32>
    %15 = arith.addi %4, %14 : vector<1x256xi32>
    %16 = arith.select %13, %15, %4 : vector<1x256xi1>, vector<1x256xi32>
    %c1_i32_3 = arith.constant 1 : i32
    %17 = vector.broadcast %c1_i32_3 : i32 to vector<1x256xi32>
    %18 = arith.cmpi sge, %16, %17 : vector<1x256xi32>
    %c17_i32 = arith.constant 17 : i32
    %19 = vector.broadcast %c17_i32 : i32 to vector<1x256xi32>
    %20 = arith.cmpi slt, %16, %19 : vector<1x256xi32>
    %21 = arith.andi %18, %20 : vector<1x256xi1>
    %c-1_i32 = arith.constant -1 : i32
    %22 = vector.broadcast %c-1_i32 : i32 to vector<1x256xi32>
    %23 = arith.cmpi sge, %16, %22 : vector<1x256xi32>
    %c15_i32 = arith.constant 15 : i32
    %24 = vector.broadcast %c15_i32 : i32 to vector<1x256xi32>
    %25 = arith.cmpi slt, %16, %24 : vector<1x256xi32>
    %26 = arith.andi %23, %25 : vector<1x256xi1>
    %c0 = arith.constant 0 : index
    %c0_4 = arith.constant 0 : index
    %c0_5 = arith.constant 0 : index
    %27 = vector.load %arg1[%c0, %c0_4, %c0_5] : memref<2x4x290xf32, #tpu.memory_space<vmem>>, vector<1x4x256xf32>
    %28 = vector.shape_cast %27 : vector<1x4x256xf32> to vector<4x256xf32>
    %cst = arith.constant 0.000000e+00 : f32
    %29 = vector.shape_cast %21 : vector<1x256xi1> to vector<1x256xi1>
    %30 = vector.broadcast %29 : vector<1x256xi1> to vector<4x256xi1>
    %31 = vector.broadcast %cst : f32 to vector<4x256xf32>
    %32 = arith.select %30, %28, %31 : vector<4x256xi1>, vector<4x256xf32>
    %c0_6 = arith.constant 0 : index
    %c0_7 = arith.constant 0 : index
    %33 = vector.load %arg5[%c0_6, %c0_7] : memref<36x512xf32, #tpu.memory_space<vmem>>, vector<4x256xf32>
    tpu.vector_store %arg5[%c0_6, %c0_7], %32 {strides = array<i32>} : memref<36x512xf32, #tpu.memory_space<vmem>>, vector<4x256xf32>,
    %c0_8 = arith.constant 0 : index
    %c0_9 = arith.constant 0 : index
    %c1 = arith.constant 1 : index
    %34 = vector.load %arg1[%c0_8, %c0_9, %c1] : memref<2x4x290xf32, #tpu.memory_space<vmem>>, vector<1x4x256xf32>
    %35 = vector.shape_cast %34 : vector<1x4x256xf32> to vector<4x256xf32>
    %c4 = arith.constant 4 : index
    %c0_10 = arith.constant 0 : index
    %36 = vector.load %arg5[%c4, %c0_10] : memref<36x512xf32, #tpu.memory_space<vmem>>, vector<4x256xf32>
    tpu.vector_store %arg5[%c4, %c0_10], %35 {strides = array<i32>} : memref<36x512xf32, #tpu.memory_space<vmem>>, vector<4x256xf32>,
    %c0_11 = arith.constant 0 : index
    %c0_12 = arith.constant 0 : index
    %c2 = arith.constant 2 : index
    %37 = vector.load %arg1[%c0_11, %c0_12, %c2] : memref<2x4x290xf32, #tpu.memory_space<vmem>>, vector<1x4x256xf32>
    %38 = vector.shape_cast %37 : vector<1x4x256xf32> to vector<4x256xf32>
    %cst_13 = arith.constant 0.000000e+00 : f32
    %39 = vector.shape_cast %26 : vector<1x256xi1> to vector<1x256xi1>
    %40 = vector.broadcast %39 : vector<1x256xi1> to vector<4x256xi1>
    %41 = vector.broadcast %cst_13 : f32 to vector<4x256xf32>
    %42 = arith.select %40, %38, %41 : vector<4x256xi1>, vector<4x256xf32>
    %c8 = arith.constant 8 : index
    %c0_14 = arith.constant 0 : index
    %43 = vector.load %arg5[%c8, %c0_14] : memref<36x512xf32, #tpu.memory_space<vmem>>, vector<4x256xf32>
    tpu.vector_store %arg5[%c8, %c0_14], %42 {strides = array<i32>} : memref<36x512xf32, #tpu.memory_space<vmem>>, vector<4x256xf32>,
    %c0_15 = arith.constant 0 : index
    %c0_16 = arith.constant 0 : index
    %c16 = arith.constant 16 : index
    %44 = vector.load %arg1[%c0_15, %c0_16, %c16] : memref<2x4x290xf32, #tpu.memory_space<vmem>>, vector<1x4x256xf32>
    %45 = vector.shape_cast %44 : vector<1x4x256xf32> to vector<4x256xf32>
    %cst_17 = arith.constant 0.000000e+00 : f32
    %46 = vector.shape_cast %21 : vector<1x256xi1> to vector<1x256xi1>
    %47 = vector.broadcast %46 : vector<1x256xi1> to vector<4x256xi1>
    %48 = vector.broadcast %cst_17 : f32 to vector<4x256xf32>
    %49 = arith.select %47, %45, %48 : vector<4x256xi1>, vector<4x256xf32>
    %c12 = arith.constant 12 : index
    %c0_18 = arith.constant 0 : index
    %50 = vector.load %arg5[%c12, %c0_18] : memref<36x512xf32, #tpu.memory_space<vmem>>, vector<4x256xf32>
    tpu.vector_store %arg5[%c12, %c0_18], %49 {strides = array<i32>} : memref<36x512xf32, #tpu.memory_space<vmem>>, vector<4x256xf32>,
    %c0_19 = arith.constant 0 : index
    %c0_20 = arith.constant 0 : index
    %c17 = arith.constant 17 : index
    %51 = vector.load %arg1[%c0_19, %c0_20, %c17] : memref<2x4x290xf32, #tpu.memory_space<vmem>>, vector<1x4x256xf32>
    %52 = vector.shape_cast %51 : vector<1x4x256xf32> to vector<4x256xf32>
    %c16_21 = arith.constant 16 : index
    %c0_22 = arith.constant 0 : index
    %53 = vector.load %arg5[%c16_21, %c0_22] : memref<36x512xf32, #tpu.memory_space<vmem>>, vector<4x256xf32>
    tpu.vector_store %arg5[%c16_21, %c0_22], %52 {strides = array<i32>} : memref<36x512xf32, #tpu.memory_space<vmem>>, vector<4x256xf32>,
    %c0_23 = arith.constant 0 : index
    %c0_24 = arith.constant 0 : index
    %c18 = arith.constant 18 : index
    %54 = vector.load %arg1[%c0_23, %c0_24, %c18] : memref<2x4x290xf32, #tpu.memory_space<vmem>>, vector<1x4x256xf32>
    %55 = vector.shape_cast %54 : vector<1x4x256xf32> to vector<4x256xf32>
    %cst_25 = arith.constant 0.000000e+00 : f32
    %56 = vector.shape_cast %26 : vector<1x256xi1> to vector<1x256xi1>
    %57 = vector.broadcast %56 : vector<1x256xi1> to vector<4x256xi1>
    %58 = vector.broadcast %cst_25 : f32 to vector<4x256xf32>
    %59 = arith.select %57, %55, %58 : vector<4x256xi1>, vector<4x256xf32>
    %c20 = arith.constant 20 : index
    %c0_26 = arith.constant 0 : index
    %60 = vector.load %arg5[%c20, %c0_26] : memref<36x512xf32, #tpu.memory_space<vmem>>, vector<4x256xf32>
    tpu.vector_store %arg5[%c20, %c0_26], %59 {strides = array<i32>} : memref<36x512xf32, #tpu.memory_space<vmem>>, vector<4x256xf32>,
    %c0_27 = arith.constant 0 : index
    %c0_28 = arith.constant 0 : index
    %c32 = arith.constant 32 : index
    %61 = vector.load %arg1[%c0_27, %c0_28, %c32] : memref<2x4x290xf32, #tpu.memory_space<vmem>>, vector<1x4x256xf32>
    %62 = vector.shape_cast %61 : vector<1x4x256xf32> to vector<4x256xf32>
    %cst_29 = arith.constant 0.000000e+00 : f32
    %63 = vector.shape_cast %21 : vector<1x256xi1> to vector<1x256xi1>
    %64 = vector.broadcast %63 : vector<1x256xi1> to vector<4x256xi1>
    %65 = vector.broadcast %cst_29 : f32 to vector<4x256xf32>
    %66 = arith.select %64, %62, %65 : vector<4x256xi1>, vector<4x256xf32>
    %c24 = arith.constant 24 : index
    %c0_30 = arith.constant 0 : index
    %67 = vector.load %arg5[%c24, %c0_30] : memref<36x512xf32, #tpu.memory_space<vmem>>, vector<4x256xf32>
    tpu.vector_store %arg5[%c24, %c0_30], %66 {strides = array<i32>} : memref<36x512xf32, #tpu.memory_space<vmem>>, vector<4x256xf32>,
    %c0_31 = arith.constant 0 : index
    %c0_32 = arith.constant 0 : index
    %c33 = arith.constant 33 : index
    %68 = vector.load %arg1[%c0_31, %c0_32, %c33] : memref<2x4x290xf32, #tpu.memory_space<vmem>>, vector<1x4x256xf32>
    %69 = vector.shape_cast %68 : vector<1x4x256xf32> to vector<4x256xf32>
    %c28 = arith.constant 28 : index
    %c0_33 = arith.constant 0 : index
    %70 = vector.load %arg5[%c28, %c0_33] : memref<36x512xf32, #tpu.memory_space<vmem>>, vector<4x256xf32>
    tpu.vector_store %arg5[%c28, %c0_33], %69 {strides = array<i32>} : memref<36x512xf32, #tpu.memory_space<vmem>>, vector<4x256xf32>,
    %c0_34 = arith.constant 0 : index
    %c0_35 = arith.constant 0 : index
    %c34 = arith.constant 34 : index
    %71 = vector.load %arg1[%c0_34, %c0_35, %c34] : memref<2x4x290xf32, #tpu.memory_space<vmem>>, vector<1x4x256xf32>
    %72 = vector.shape_cast %71 : vector<1x4x256xf32> to vector<4x256xf32>
    %cst_36 = arith.constant 0.000000e+00 : f32
    %73 = vector.shape_cast %26 : vector<1x256xi1> to vector<1x256xi1>
    %74 = vector.broadcast %73 : vector<1x256xi1> to vector<4x256xi1>
    %75 = vector.broadcast %cst_36 : f32 to vector<4x256xf32>
    %76 = arith.select %74, %72, %75 : vector<4x256xi1>, vector<4x256xf32>
    %c32_37 = arith.constant 32 : index
    %c0_38 = arith.constant 0 : index
    %77 = vector.load %arg5[%c32_37, %c0_38] : memref<36x512xf32, #tpu.memory_space<vmem>>, vector<4x256xf32>
    tpu.vector_store %arg5[%c32_37, %c0_38], %76 {strides = array<i32>} : memref<36x512xf32, #tpu.memory_space<vmem>>, vector<4x256xf32>,
    %c1_39 = arith.constant 1 : index
    %c0_40 = arith.constant 0 : index
    %c0_41 = arith.constant 0 : index
    %78 = vector.load %arg1[%c1_39, %c0_40, %c0_41] : memref<2x4x290xf32, #tpu.memory_space<vmem>>, vector<1x4x256xf32>
    %79 = vector.shape_cast %78 : vector<1x4x256xf32> to vector<4x256xf32>
    %cst_42 = arith.constant 0.000000e+00 : f32
    %80 = vector.shape_cast %21 : vector<1x256xi1> to vector<1x256xi1>
    %81 = vector.broadcast %80 : vector<1x256xi1> to vector<4x256xi1>
    %82 = vector.broadcast %cst_42 : f32 to vector<4x256xf32>
    %83 = arith.select %81, %79, %82 : vector<4x256xi1>, vector<4x256xf32>
    %c0_43 = arith.constant 0 : index
    %c256 = arith.constant 256 : index
    %84 = vector.load %arg5[%c0_43, %c256] : memref<36x512xf32, #tpu.memory_space<vmem>>, vector<4x256xf32>
    tpu.vector_store %arg5[%c0_43, %c256], %83 {strides = array<i32>} : memref<36x512xf32, #tpu.memory_space<vmem>>, vector<4x256xf32>,
    %c1_44 = arith.constant 1 : index
    %c0_45 = arith.constant 0 : index
    %c1_46 = arith.constant 1 : index
    %85 = vector.load %arg1[%c1_44, %c0_45, %c1_46] : memref<2x4x290xf32, #tpu.memory_space<vmem>>, vector<1x4x256xf32>
    %86 = vector.shape_cast %85 : vector<1x4x256xf32> to vector<4x256xf32>
    %c4_47 = arith.constant 4 : index
    %c256_48 = arith.constant 256 : index
    %87 = vector.load %arg5[%c4_47, %c256_48] : memref<36x512xf32, #tpu.memory_space<vmem>>, vector<4x256xf32>
    tpu.vector_store %arg5[%c4_47, %c256_48], %86 {strides = array<i32>} : memref<36x512xf32, #tpu.memory_space<vmem>>, vector<4x256xf32>,
    %c1_49 = arith.constant 1 : index
    %c0_50 = arith.constant 0 : index
    %c2_51 = arith.constant 2 : index
    %88 = vector.load %arg1[%c1_49, %c0_50, %c2_51] : memref<2x4x290xf32, #tpu.memory_space<vmem>>, vector<1x4x256xf32>
    %89 = vector.shape_cast %88 : vector<1x4x256xf32> to vector<4x256xf32>
    %cst_52 = arith.constant 0.000000e+00 : f32
    %90 = vector.shape_cast %26 : vector<1x256xi1> to vector<1x256xi1>
    %91 = vector.broadcast %90 : vector<1x256xi1> to vector<4x256xi1>
    %92 = vector.broadcast %cst_52 : f32 to vector<4x256xf32>
    %93 = arith.select %91, %89, %92 : vector<4x256xi1>, vector<4x256xf32>
    %c8_53 = arith.constant 8 : index
    %c256_54 = arith.constant 256 : index
    %94 = vector.load %arg5[%c8_53, %c256_54] : memref<36x512xf32, #tpu.memory_space<vmem>>, vector<4x256xf32>
    tpu.vector_store %arg5[%c8_53, %c256_54], %93 {strides = array<i32>} : memref<36x512xf32, #tpu.memory_space<vmem>>, vector<4x256xf32>,
    %c1_55 = arith.constant 1 : index
    %c0_56 = arith.constant 0 : index
    %c16_57 = arith.constant 16 : index
    %95 = vector.load %arg1[%c1_55, %c0_56, %c16_57] : memref<2x4x290xf32, #tpu.memory_space<vmem>>, vector<1x4x256xf32>
    %96 = vector.shape_cast %95 : vector<1x4x256xf32> to vector<4x256xf32>
    %cst_58 = arith.constant 0.000000e+00 : f32
    %97 = vector.shape_cast %21 : vector<1x256xi1> to vector<1x256xi1>
    %98 = vector.broadcast %97 : vector<1x256xi1> to vector<4x256xi1>
    %99 = vector.broadcast %cst_58 : f32 to vector<4x256xf32>
    %100 = arith.select %98, %96, %99 : vector<4x256xi1>, vector<4x256xf32>
    %c12_59 = arith.constant 12 : index
    %c256_60 = arith.constant 256 : index
    %101 = vector.load %arg5[%c12_59, %c256_60] : memref<36x512xf32, #tpu.memory_space<vmem>>, vector<4x256xf32>
    tpu.vector_store %arg5[%c12_59, %c256_60], %100 {strides = array<i32>} : memref<36x512xf32, #tpu.memory_space<vmem>>, vector<4x256xf32>,
    %c1_61 = arith.constant 1 : index
    %c0_62 = arith.constant 0 : index
    %c17_63 = arith.constant 17 : index
    %102 = vector.load %arg1[%c1_61, %c0_62, %c17_63] : memref<2x4x290xf32, #tpu.memory_space<vmem>>, vector<1x4x256xf32>
    %103 = vector.shape_cast %102 : vector<1x4x256xf32> to vector<4x256xf32>
    %c16_64 = arith.constant 16 : index
    %c256_65 = arith.constant 256 : index
    %104 = vector.load %arg5[%c16_64, %c256_65] : memref<36x512xf32, #tpu.memory_space<vmem>>, vector<4x256xf32>
    tpu.vector_store %arg5[%c16_64, %c256_65], %103 {strides = array<i32>} : memref<36x512xf32, #tpu.memory_space<vmem>>, vector<4x256xf32>,
    %c1_66 = arith.constant 1 : index
    %c0_67 = arith.constant 0 : index
    %c18_68 = arith.constant 18 : index
    %105 = vector.load %arg1[%c1_66, %c0_67, %c18_68] : memref<2x4x290xf32, #tpu.memory_space<vmem>>, vector<1x4x256xf32>
    %106 = vector.shape_cast %105 : vector<1x4x256xf32> to vector<4x256xf32>
    %cst_69 = arith.constant 0.000000e+00 : f32
    %107 = vector.shape_cast %26 : vector<1x256xi1> to vector<1x256xi1>
    %108 = vector.broadcast %107 : vector<1x256xi1> to vector<4x256xi1>
    %109 = vector.broadcast %cst_69 : f32 to vector<4x256xf32>
    %110 = arith.select %108, %106, %109 : vector<4x256xi1>, vector<4x256xf32>
    %c20_70 = arith.constant 20 : index
    %c256_71 = arith.constant 256 : index
    %111 = vector.load %arg5[%c20_70, %c256_71] : memref<36x512xf32, #tpu.memory_space<vmem>>, vector<4x256xf32>
    tpu.vector_store %arg5[%c20_70, %c256_71], %110 {strides = array<i32>} : memref<36x512xf32, #tpu.memory_space<vmem>>, vector<4x256xf32>,
    %c1_72 = arith.constant 1 : index
    %c0_73 = arith.constant 0 : index
    %c32_74 = arith.constant 32 : index
    %112 = vector.load %arg1[%c1_72, %c0_73, %c32_74] : memref<2x4x290xf32, #tpu.memory_space<vmem>>, vector<1x4x256xf32>
    %113 = vector.shape_cast %112 : vector<1x4x256xf32> to vector<4x256xf32>
    %cst_75 = arith.constant 0.000000e+00 : f32
    %114 = vector.shape_cast %21 : vector<1x256xi1> to vector<1x256xi1>
    %115 = vector.broadcast %114 : vector<1x256xi1> to vector<4x256xi1>
    %116 = vector.broadcast %cst_75 : f32 to vector<4x256xf32>
    %117 = arith.select %115, %113, %116 : vector<4x256xi1>, vector<4x256xf32>
    %c24_76 = arith.constant 24 : index
    %c256_77 = arith.constant 256 : index
    %118 = vector.load %arg5[%c24_76, %c256_77] : memref<36x512xf32, #tpu.memory_space<vmem>>, vector<4x256xf32>
    tpu.vector_store %arg5[%c24_76, %c256_77], %117 {strides = array<i32>} : memref<36x512xf32, #tpu.memory_space<vmem>>, vector<4x256xf32>,
    %c1_78 = arith.constant 1 : index
    %c0_79 = arith.constant 0 : index
    %c33_80 = arith.constant 33 : index
    %119 = vector.load %arg1[%c1_78, %c0_79, %c33_80] : memref<2x4x290xf32, #tpu.memory_space<vmem>>, vector<1x4x256xf32>
    %120 = vector.shape_cast %119 : vector<1x4x256xf32> to vector<4x256xf32>
    %c28_81 = arith.constant 28 : index
    %c256_82 = arith.constant 256 : index
    %121 = vector.load %arg5[%c28_81, %c256_82] : memref<36x512xf32, #tpu.memory_space<vmem>>, vector<4x256xf32>
    tpu.vector_store %arg5[%c28_81, %c256_82], %120 {strides = array<i32>} : memref<36x512xf32, #tpu.memory_space<vmem>>, vector<4x256xf32>,
    %c1_83 = arith.constant 1 : index
    %c0_84 = arith.constant 0 : index
    %c34_85 = arith.constant 34 : index
    %122 = vector.load %arg1[%c1_83, %c0_84, %c34_85] : memref<2x4x290xf32, #tpu.memory_space<vmem>>, vector<1x4x256xf32>
    %123 = vector.shape_cast %122 : vector<1x4x256xf32> to vector<4x256xf32>
    %cst_86 = arith.constant 0.000000e+00 : f32
    %124 = vector.shape_cast %26 : vector<1x256xi1> to vector<1x256xi1>
    %125 = vector.broadcast %124 : vector<1x256xi1> to vector<4x256xi1>
    %126 = vector.broadcast %cst_86 : f32 to vector<4x256xf32>
    %127 = arith.select %125, %123, %126 : vector<4x256xi1>, vector<4x256xf32>
    %c32_87 = arith.constant 32 : index
    %c256_88 = arith.constant 256 : index
    %128 = vector.load %arg5[%c32_87, %c256_88] : memref<36x512xf32, #tpu.memory_space<vmem>>, vector<4x256xf32>
    tpu.vector_store %arg5[%c32_87, %c256_88], %127 {strides = array<i32>} : memref<36x512xf32, #tpu.memory_space<vmem>>, vector<4x256xf32>,
    %c0_89 = arith.constant 0 : index
    %c0_90 = arith.constant 0 : index
    %129 = vector.load %arg2[%c0_89, %c0_90] : memref<8x36xf32, #tpu.memory_space<vmem>>, vector<8x36xf32>
    %c0_91 = arith.constant 0 : index
    %c0_92 = arith.constant 0 : index
    %130 = vector.load %arg5[%c0_91, %c0_92] : memref<36x512xf32, #tpu.memory_space<vmem>>, vector<36x512xf32>
    %cst_93 = arith.constant dense<0.000000e+00> : vector<8x512xf32>
    %131 = tpu.matmul %129, %130, %cst_93 {dimension_numbers = #tpu.dot_dimension_numbers<[1], [0], [0], [1], [0, 0, 1, 1], [], []>} : vector<8x36xf32>, vector<36x512xf32>, vector<8x512xf32> -> vector<8x512xf32>
    %c0_94 = arith.constant 0 : index
    %c0_95 = arith.constant 0 : index
    %132 = vector.load %arg3[%c0_94, %c0_95] : memref<8x1xf32, #tpu.memory_space<vmem>>, vector<8x1xf32>
    %133 = vector.broadcast %132 : vector<8x1xf32> to vector<8x512xf32>
    %134 = arith.addf %131, %133 : vector<8x512xf32>
    %135 = vector.extract_strided_slice %134 {offsets = [0, 0], sizes = [8, 256], strides = [1, 1]} : vector<8x512xf32> to vector<8x256xf32>
    %c0_96 = arith.constant 0 : index
    %c0_97 = arith.constant 0 : index
    %c0_98 = arith.constant 0 : index
    %136 = vector.load %arg4[%c0_96, %c0_97, %c0_98] : memref<2x8x256xf32, #tpu.memory_space<vmem>>, vector<1x8x256xf32>
    %137 = vector.shape_cast %136 : vector<1x8x256xf32> to vector<8x256xf32>
    %138 = vector.shape_cast %135 : vector<8x256xf32> to vector<1x8x256xf32>
    tpu.vector_store %arg4[%c0_96, %c0_97, %c0_98], %138 {strides = array<i32>} : memref<2x8x256xf32, #tpu.memory_space<vmem>>, vector<1x8x256xf32>,
    %139 = vector.extract_strided_slice %134 {offsets = [0, 256], sizes = [8, 256], strides = [1, 1]} : vector<8x512xf32> to vector<8x256xf32>
    %c1_99 = arith.constant 1 : index
    %c0_100 = arith.constant 0 : index
    %c0_101 = arith.constant 0 : index
    %140 = vector.load %arg4[%c1_99, %c0_100, %c0_101] : memref<2x8x256xf32, #tpu.memory_space<vmem>>, vector<1x8x256xf32>
    %141 = vector.shape_cast %140 : vector<1x8x256xf32> to vector<8x256xf32>
    %142 = vector.shape_cast %139 : vector<8x256xf32> to vector<1x8x256xf32>
    tpu.vector_store %arg4[%c1_99, %c0_100, %c0_101], %142 {strides = array<i32>} : memref<2x8x256xf32, #tpu.memory_space<vmem>>, vector<1x8x256xf32>,
    return
  }
  func.func @transform_0(%arg0: i32) -> (i32, i32, i32) {
    %c0_i32 = arith.constant 0 : i32
    %c0_i32_0 = arith.constant 0 : i32
    %c0_i32_1 = arith.constant 0 : i32
    return %arg0, %c0_i32, %c0_i32_0 : i32, i32, i32
  }
  func.func @transform_1(%arg0: i32) -> (i32, i32) {
    %c0_i32 = arith.constant 0 : i32
    %c0_i32_0 = arith.constant 0 : i32
    %c0_i32_1 = arith.constant 0 : i32
    return %c0_i32, %c0_i32_0 : i32, i32
  }
  func.func @transform_2(%arg0: i32) -> (i32, i32) {
    %c0_i32 = arith.constant 0 : i32
    %c0_i32_0 = arith.constant 0 : i32
    %c0_i32_1 = arith.constant 0 : i32
    return %c0_i32, %c0_i32_0 : i32, i32
  }
  func.func @transform_3(%arg0: i32) -> (i32, i32, i32) {
    %c0_i32 = arith.constant 0 : i32
    %c0_i32_0 = arith.constant 0 : i32
    %c0_i32_1 = arith.constant 0 : i32
    return %arg0, %c0_i32, %c0_i32_0 : i32, i32, i32
  }
}

</mosaic_0001>

<llo_original>
// kernel: tpu_custom_call.1
$region0: #{tpu_custom_call.1}
  #allocation0 [shape = 'u32[]', space=smem, size = 0x4, offset = 0x4, fixed_abs, tag = 'smem constant byte address 0x4 - core index']
  #allocation1 [shape = 'u32[144,128]{1,0:T(1,128)}', space=vmem, size = 0x12000, scoped, tag = 'internal scratch']
  #allocation2 [shape = 'f32[36,512]{1,0:T(8,128)}', space=vmem, size = 0x14000, scoped, tag = 'scratch operand']
  %s0 = inlined_call_operand.hbm [shape: f32[2,4,290], index: 0, kind: input, shape index: {}]
  %s1 = inlined_call_operand.vmem [shape: f32[8,36], index: 1, kind: input, shape index: {}]
  %s2 = inlined_call_operand.vmem [shape: f32[8,1], index: 2, kind: input, shape index: {}]
  %s3 = inlined_call_operand.hbm [shape: f32[2,8,256], index: 3, kind: output, shape index: {}]
  %s4 = sld [smem:[#allocation0]]
  $region26: #{tpu_custom_call.1} parent=0
    _
  %s6 = ssub.s32 1, %s4
  %s7 = scalar_select 0, %s6, %s4
  $region1: #{tpu_custom_call.1} parent=0
    #allocation3 [shape = 'u8[12288]{0}', space=vmem, size = 0x3000, scoped, tag = 'input window, operand 0, single buffered']
    #allocation4 [shape = 's32[1]{0}', space=sflag, size = 0x4, scoped, tag = 'scoped memory for tpu_custom_call.1']
    #allocation5 [shape = 's32[1]{0}', space=sflag, size = 0x4, scoped, tag = 'scoped memory for tpu_custom_call.1']
    #allocation6 [shape = 'u8[16384]{0}', space=vmem, size = 0x4000, scoped, tag = 'output window, operand 0, single buffered']
    %8 = vsyncpa [#allocation4], 0
    %9 = vsyncpa [#allocation5], 0
    // Predicated region
    $region2: #{tpu_custom_call.1} parent=1 // pred_check
      _
    $region3: #{tpu_custom_call.1} parent=1 // pred_check_branch
      %11 = sbr.rel (0) target = $region5
    $region4: #{tpu_custom_call.1} parent=1 // pred_region
      %s13 = ssub.s32 384, 384
      %14 = vsyncadd [#allocation4], %s13
      %s15 = sshll.u32 [#allocation3], 4
      %s16 = int_to_ptr.vmem [resolvable:$true] %s15
      %21 = dma.hbm_to_vmem [thread:$0]  %s0, 384, %s16, [#allocation4], 192, 192, 12
    $region5: #{tpu_custom_call.1} parent=1 // pred_fallthru
      _
    // Predicated region
    $region6: #{tpu_custom_call.1} parent=1 // pred_check
      _
    $region7: #{tpu_custom_call.1} parent=1 // pred_check_branch
      %23 = sbr.rel (0) target = $region9
    $region8: #{tpu_custom_call.1} parent=1 // pred_region
      _
    $region9: #{tpu_custom_call.1} parent=1 // pred_fallthru
      _
    // Predicated region
    $region10: #{tpu_custom_call.1} parent=1 // pred_check
      _
    $region11: #{tpu_custom_call.1} parent=1 // pred_check_branch
      %25 = sbr.rel (0) target = $region13
    $region12: #{tpu_custom_call.1} parent=1 // pred_region
      _
    $region13: #{tpu_custom_call.1} parent=1 // pred_fallthru
      _
    // Predicated region
    $region14: #{tpu_custom_call.1} parent=1 // pred_check
      _
    $region15: #{tpu_custom_call.1} parent=1 // pred_check_branch
      %27 = sbr.rel (0) target = $region17
    $region16: #{tpu_custom_call.1} parent=1 // pred_region
      %28 = dma.done [#allocation4], 384
    $region17: #{tpu_custom_call.1} parent=1 // pred_fallthru
      _
    %v29 = vlaneseq
    %v30 = vand.u32 %v29, 127
    %v31 = vadd.s32 %v30, 128
    %vm32 = vcmp.lt.s32.totalorder %v30, 0
    %v33 = vsub.s32 0, %v30
    %v34 = vsel %vm32, %v33, %v30
    %v35 = vshrl.u32 %v34, 4
    %v36 = vand.u32 %v34, 15
    %v37 = vsub.s32 0, %v36
    %v38 = vsel %vm32, %v37, %v36
    %vm39 = vcmp.lt.s32.totalorder %v31, 0
    %v40 = vsub.s32 0, %v31
    %v41 = vsel %vm39, %v40, %v31
    %v42 = vshrl.u32 %v41, 4
    %v43 = vand.u32 %v41, 15
    %v44 = vsub.s32 0, %v43
    %v45 = vsel %vm39, %v44, %v43
    %vm46 = vcmp.ne.s32.totalorder %v38, 0
    %vm47 = vcmp.ne.s32.totalorder %v45, 0
    %vm48 = vcmp.lt.s32.totalorder %v38, 0
    %vm49 = vcmp.lt.s32.totalorder %v45, 0
    %vm50 = vmand %vm48, %vm46
    %vm51 = vmand %vm49, %vm47
    %v52 = vadd.s32 %v38, 16
    %v53 = vadd.s32 %v45, 16
    %v54 = vsel %vm50, %v52, %v38
    %v55 = vsel %vm51, %v53, %v45
    %vm56 = vcmp.ge.s32.totalorder %v54, 1
    %vm57 = vcmp.ge.s32.totalorder %v55, 1
    %vm58 = vcmp.lt.s32.totalorder %v54, 17
    %vm59 = vcmp.lt.s32.totalorder %v55, 17
    %vm60 = vmand %vm56, %vm58
    %vm61 = vmand %vm57, %vm59
    %vm62 = vcmp.ge.s32.totalorder %v54, 4294967295
    %vm63 = vcmp.ge.s32.totalorder %v55, 4294967295
    %vm64 = vcmp.lt.s32.totalorder %v54, 15
    %vm65 = vcmp.lt.s32.totalorder %v55, 15
    %vm66 = vmand %vm62, %vm64
    %vm67 = vmand %vm63, %vm65
    %v68 = vld [vmem:[#allocation3] sm:$0xff]
    %v69 = vsel %vm60, 1, 0
    %v70 = vsel %vm61, 1, 0
    %vm71 = vcmp.eq.s32.totalorder %v69, 1
    %vm72 = vcmp.eq.s32.totalorder %v70, 1
    %v74 = vcombine.high %v68, %v68
    %v76 = vsel %vm71, %v68, 0.0
    %v77 = vsel %vm72, %v74, 0.0
    %78 = vst [vmem:[#allocation2] sm:$0xf] %v76
    %79 = vst [vmem:[#allocation2 + $0x8] sm:$0xf] %v77
    %v80 = vld [vmem:[#allocation3] sm:$0xff]
    %v81 = vld [vmem:[#allocation3 + $0x8] sm:$0xf]
    %v84 = vcombine.low %v80, %v80
    %v85 = vcombine.low %v81, %v81
    %86 = vrot.lane.b32.xlu0 %v84, 127
    %v87 = vpop.permute.xlu0 %86
    %88 = vrot.lane.b32.xlu0 %v80, 127
    %v89 = vpop.permute.xlu0 %88
    %90 = vrot.lane.b32.xlu0 %v85, 127
    %v91 = vpop.permute.xlu0 %90
    %vm92 = vcmask 1039360
    %v93 = vsel %vm92, %v87, %v89
    %v94 = vsel %vm92, %v89, %v91
    %97 = vst [vmem:[#allocation2] sm:$0xf0] %v93
    %98 = vst [vmem:[#allocation2 + $0x8] sm:$0xf0] %v94
    %v99 = vld [vmem:[#allocation3] sm:$0xff]
    %v100 = vld [vmem:[#allocation3 + $0x8] sm:$0xf]
    %v101 = vsel %vm66, 1, 0
    %v102 = vsel %vm67, 1, 0
    %vm103 = vcmp.eq.s32.totalorder %v101, 1
    %vm104 = vcmp.eq.s32.totalorder %v102, 1
    %v107 = vcombine.high %v99, %v99
    %108 = vrot.lane.b32.xlu0 %v99, 126
    %v109 = vpop.permute.xlu0 %108
    %110 = vrot.lane.b32.xlu0 %v107, 126
    %v111 = vpop.permute.xlu0 %110
    %112 = vrot.lane.b32.xlu0 %v100, 126
    %v113 = vpop.permute.xlu0 %112
    %vm114 = vcmask 1031168
    %v115 = vsel %vm114, %v109, %v111
    %v116 = vsel %vm114, %v111, %v113
    %v119 = vsel %vm103, %v115, 0.0
    %v120 = vsel %vm104, %v116, 0.0
    %121 = vst [vmem:[#allocation2 + $0x20] sm:$0xf] %v119
    %122 = vst [vmem:[#allocation2 + $0x28] sm:$0xf] %v120
    %v123 = vld [vmem:[#allocation3] sm:$0xff]
    %v124 = vld [vmem:[#allocation3 + $0x8] sm:$0xf]
    %v127 = vcombine.high %v123, %v123
    %128 = vrot.lane.b32.xlu0 %v123, 112
    %v129 = vpop.permute.xlu0 %128
    %130 = vrot.lane.b32.xlu0 %v127, 112
    %v131 = vpop.permute.xlu0 %130
    %132 = vrot.lane.b32.xlu0 %v124, 112
    %v133 = vpop.permute.xlu0 %132
    %vm134 = vcmask 916480
    %v135 = vsel %vm134, %v129, %v131
    %v136 = vsel %vm134, %v131, %v133
    %v139 = vsel %vm71, %v135, 0.0
    %v140 = vsel %vm72, %v136, 0.0
    %v143 = vrot.slane %v139, 4
    %v144 = vrot.slane %v140, 4
    %147 = vst [vmem:[#allocation2 + $0x20] sm:$0xf0] %v143
    %148 = vst [vmem:[#allocation2 + $0x28] sm:$0xf0] %v144
    %v149 = vld [vmem:[#allocation3] sm:$0xff]
    %v150 = vld [vmem:[#allocation3 + $0x8] sm:$0xf]
    %v153 = vcombine.high %v149, %v149
    %154 = vrot.lane.b32.xlu0 %v149, 111
    %v155 = vpop.permute.xlu0 %154
    %156 = vrot.lane.b32.xlu0 %v153, 111
    %v157 = vpop.permute.xlu0 %156
    %158 = vrot.lane.b32.xlu0 %v150, 111
    %v159 = vpop.permute.xlu0 %158
    %vm160 = vcmask 908288
    %v161 = vsel %vm160, %v155, %v157
    %v162 = vsel %vm160, %v157, %v159
    %165 = vst [vmem:[#allocation2 + $0x40] sm:$0xf] %v161
    %166 = vst [vmem:[#allocation2 + $0x48] sm:$0xf] %v162
    %v167 = vld [vmem:[#allocation3] sm:$0xff]
    %v168 = vld [vmem:[#allocation3 + $0x8] sm:$0xf]
    %v171 = vcombine.high %v167, %v167
    %172 = vrot.lane.b32.xlu0 %v167, 110
    %v173 = vpop.permute.xlu0 %172
    %174 = vrot.lane.b32.xlu0 %v171, 110
    %v175 = vpop.permute.xlu0 %174
    %176 = vrot.lane.b32.xlu0 %v168, 110
    %v177 = vpop.permute.xlu0 %176
    %vm178 = vcmask 900096
    %v179 = vsel %vm178, %v173, %v175
    %v180 = vsel %vm178, %v175, %v177
    %v183 = vsel %vm103, %v179, 0.0
    %v184 = vsel %vm104, %v180, 0.0
    %v187 = vrot.slane %v183, 4
    %v188 = vrot.slane %v184, 4
    %191 = vst [vmem:[#allocation2 + $0x40] sm:$0xf0] %v187
    %192 = vst [vmem:[#allocation2 + $0x48] sm:$0xf0] %v188
    %v193 = vld [vmem:[#allocation3] sm:$0xff]
    %v194 = vld [vmem:[#allocation3 + $0x8] sm:$0xf]
    %v197 = vcombine.high %v193, %v193
    %198 = vrot.lane.b32.xlu0 %v193, 96
    %v199 = vpop.permute.xlu0 %198
    %200 = vrot.lane.b32.xlu0 %v197, 96
    %v201 = vpop.permute.xlu0 %200
    %202 = vrot.lane.b32.xlu0 %v194, 96
    %v203 = vpop.permute.xlu0 %202
    %vm204 = vcmask 785408
    %v205 = vsel %vm204, %v199, %v201
    %v206 = vsel %vm204, %v201, %v203
    %v209 = vsel %vm71, %v205, 0.0
    %v210 = vsel %vm72, %v206, 0.0
    %211 = vst [vmem:[#allocation2 + $0x60] sm:$0xf] %v209
    %212 = vst [vmem:[#allocation2 + $0x68] sm:$0xf] %v210
    %v213 = vld [vmem:[#allocation3] sm:$0xff]
    %v214 = vld [vmem:[#allocation3 + $0x8] sm:$0xf]
    %v217 = vcombine.low %v213, %v213
    %v218 = vcombine.low %v214, %v214
    %219 = vrot.lane.b32.xlu0 %v217, 95
    %v220 = vpop.permute.xlu0 %219
    %221 = vrot.lane.b32.xlu0 %v213, 95
    %v222 = vpop.permute.xlu0 %221
    %223 = vrot.lane.b32.xlu0 %v218, 95
    %v224 = vpop.permute.xlu0 %223
    %vm225 = vcmask 777216
    %v226 = vsel %vm225, %v220, %v222
    %v227 = vsel %vm225, %v222, %v224
    %230 = vst [vmem:[#allocation2 + $0x60] sm:$0xf0] %v226
    %231 = vst [vmem:[#allocation2 + $0x68] sm:$0xf0] %v227
    %v232 = vld [vmem:[#allocation3] sm:$0xff]
    %v233 = vld [vmem:[#allocation3 + $0x8] sm:$0xf]
    %v236 = vcombine.high %v232, %v232
    %237 = vrot.lane.b32.xlu0 %v232, 94
    %v238 = vpop.permute.xlu0 %237
    %239 = vrot.lane.b32.xlu0 %v236, 94
    %v240 = vpop.permute.xlu0 %239
    %241 = vrot.lane.b32.xlu0 %v233, 94
    %v242 = vpop.permute.xlu0 %241
    %vm243 = vcmask 769024
    %v244 = vsel %vm243, %v238, %v240
    %v245 = vsel %vm243, %v240, %v242
    %v248 = vsel %vm103, %v244, 0.0
    %v249 = vsel %vm104, %v245, 0.0
    %250 = vst [vmem:[#allocation2 + $0x80] sm:$0xf] %v248
    %251 = vst [vmem:[#allocation2 + $0x88] sm:$0xf] %v249
    %s252 = scalar_lea.vmem [#allocation3], 12
    %v253 = vld [vmem:[%s252] sm:$0xff]
    %v255 = vcombine.high %v253, %v253
    %v257 = vsel %vm71, %v253, 0.0
    %v258 = vsel %vm72, %v255, 0.0
    %259 = vst [vmem:[#allocation2 + $0x10] sm:$0xf] %v257
    %260 = vst [vmem:[#allocation2 + $0x18] sm:$0xf] %v258
    %v261 = vld [vmem:[%s252] sm:$0xff]
    %v262 = vld [vmem:[%s252 + $0x8] sm:$0xf]
    %v265 = vcombine.low %v261, %v261
    %v266 = vcombine.low %v262, %v262
    %267 = vrot.lane.b32.xlu0 %v265, 127
    %v268 = vpop.permute.xlu0 %267
    %269 = vrot.lane.b32.xlu0 %v261, 127
    %v270 = vpop.permute.xlu0 %269
    %271 = vrot.lane.b32.xlu0 %v266, 127
    %v272 = vpop.permute.xlu0 %271
    %v273 = vsel %vm92, %v268, %v270
    %v274 = vsel %vm92, %v270, %v272
    %277 = vst [vmem:[#allocation2 + $0x10] sm:$0xf0] %v273
    %278 = vst [vmem:[#allocation2 + $0x18] sm:$0xf0] %v274
    %v279 = vld [vmem:[%s252] sm:$0xff]
    %v280 = vld [vmem:[%s252 + $0x8] sm:$0xf]
    %v283 = vcombine.high %v279, %v279
    %284 = vrot.lane.b32.xlu0 %v279, 126
    %v285 = vpop.permute.xlu0 %284
    %286 = vrot.lane.b32.xlu0 %v283, 126
    %v287 = vpop.permute.xlu0 %286
    %288 = vrot.lane.b32.xlu0 %v280, 126
    %v289 = vpop.permute.xlu0 %288
    %v290 = vsel %vm114, %v285, %v287
    %v291 = vsel %vm114, %v287, %v289
    %v294 = vsel %vm103, %v290, 0.0
    %v295 = vsel %vm104, %v291, 0.0
    %296 = vst [vmem:[#allocation2 + $0x30] sm:$0xf] %v294
    %297 = vst [vmem:[#allocation2 + $0x38] sm:$0xf] %v295
    %v298 = vld [vmem:[%s252] sm:$0xff]
    %v299 = vld [vmem:[%s252 + $0x8] sm:$0xf]
    %v302 = vcombine.high %v298, %v298
    %303 = vrot.lane.b32.xlu0 %v298, 112
    %v304 = vpop.permute.xlu0 %303
    %305 = vrot.lane.b32.xlu0 %v302, 112
    %v306 = vpop.permute.xlu0 %305
    %307 = vrot.lane.b32.xlu0 %v299, 112
    %v308 = vpop.permute.xlu0 %307
    %v309 = vsel %vm134, %v304, %v306
    %v310 = vsel %vm134, %v306, %v308
    %v313 = vsel %vm71, %v309, 0.0
    %v314 = vsel %vm72, %v310, 0.0
    %v317 = vrot.slane %v313, 4
    %v318 = vrot.slane %v314, 4
    %321 = vst [vmem:[#allocation2 + $0x30] sm:$0xf0] %v317
    %322 = vst [vmem:[#allocation2 + $0x38] sm:$0xf0] %v318
    %v323 = vld [vmem:[%s252] sm:$0xff]
    %v324 = vld [vmem:[%s252 + $0x8] sm:$0xf]
    %v327 = vcombine.high %v323, %v323
    %328 = vrot.lane.b32.xlu0 %v323, 111
    %v329 = vpop.permute.xlu0 %328
    %330 = vrot.lane.b32.xlu0 %v327, 111
    %v331 = vpop.permute.xlu0 %330
    %332 = vrot.lane.b32.xlu0 %v324, 111
    %v333 = vpop.permute.xlu0 %332
    %v334 = vsel %vm160, %v329, %v331
    %v335 = vsel %vm160, %v331, %v333
    %338 = vst [vmem:[#allocation2 + $0x50] sm:$0xf] %v334
    %339 = vst [vmem:[#allocation2 + $0x58] sm:$0xf] %v335
    %v340 = vld [vmem:[%s252] sm:$0xff]
    %v341 = vld [vmem:[%s252 + $0x8] sm:$0xf]
    %v344 = vcombine.high %v340, %v340
    %345 = vrot.lane.b32.xlu0 %v340, 110
    %v346 = vpop.permute.xlu0 %345
    %347 = vrot.lane.b32.xlu0 %v344, 110
    %v348 = vpop.permute.xlu0 %347
    %349 = vrot.lane.b32.xlu0 %v341, 110
    %v350 = vpop.permute.xlu0 %349
    %v351 = vsel %vm178, %v346, %v348
    %v352 = vsel %vm178, %v348, %v350
    %v355 = vsel %vm103, %v351, 0.0
    %v356 = vsel %vm104, %v352, 0.0
    %v359 = vrot.slane %v355, 4
    %v360 = vrot.slane %v356, 4
    %363 = vst [vmem:[#allocation2 + $0x50] sm:$0xf0] %v359
    %364 = vst [vmem:[#allocation2 + $0x58] sm:$0xf0] %v360
    %v365 = vld [vmem:[%s252] sm:$0xff]
    %v366 = vld [vmem:[%s252 + $0x8] sm:$0xf]
    %v369 = vcombine.high %v365, %v365
    %370 = vrot.lane.b32.xlu0 %v365, 96
    %v371 = vpop.permute.xlu0 %370
    %372 = vrot.lane.b32.xlu0 %v369, 96
    %v373 = vpop.permute.xlu0 %372
    %374 = vrot.lane.b32.xlu0 %v366, 96
    %v375 = vpop.permute.xlu0 %374
    %v376 = vsel %vm204, %v371, %v373
    %v377 = vsel %vm204, %v373, %v375
    %v380 = vsel %vm71, %v376, 0.0
    %v381 = vsel %vm72, %v377, 0.0
    %382 = vst [vmem:[#allocation2 + $0x70] sm:$0xf] %v380
    %383 = vst [vmem:[#allocation2 + $0x78] sm:$0xf] %v381
    %v384 = vld [vmem:[%s252] sm:$0xff]
    %v385 = vld [vmem:[%s252 + $0x8] sm:$0xf]
    %v388 = vcombine.low %v384, %v384
    %v389 = vcombine.low %v385, %v385
    %390 = vrot.lane.b32.xlu0 %v388, 95
    %v391 = vpop.permute.xlu0 %390
    %392 = vrot.lane.b32.xlu0 %v384, 95
    %v393 = vpop.permute.xlu0 %392
    %394 = vrot.lane.b32.xlu0 %v389, 95
    %v395 = vpop.permute.xlu0 %394
    %v396 = vsel %vm225, %v391, %v393
    %v397 = vsel %vm225, %v393, %v395
    %400 = vst [vmem:[#allocation2 + $0x70] sm:$0xf0] %v396
    %401 = vst [vmem:[#allocation2 + $0x78] sm:$0xf0] %v397
    %v402 = vld [vmem:[%s252] sm:$0xff]
    %v403 = vld [vmem:[%s252 + $0x8] sm:$0xf]
    %v406 = vcombine.high %v402, %v402
    %407 = vrot.lane.b32.xlu0 %v402, 94
    %v408 = vpop.permute.xlu0 %407
    %409 = vrot.lane.b32.xlu0 %v406, 94
    %v410 = vpop.permute.xlu0 %409
    %411 = vrot.lane.b32.xlu0 %v403, 94
    %v412 = vpop.permute.xlu0 %411
    %v413 = vsel %vm243, %v408, %v410
    %v414 = vsel %vm243, %v410, %v412
    %v417 = vsel %vm103, %v413, 0.0
    %v418 = vsel %vm104, %v414, 0.0
    %419 = vst [vmem:[#allocation2 + $0x90] sm:$0xf] %v417
    %420 = vst [vmem:[#allocation2 + $0x98] sm:$0xf] %v418
    %v421 = vld [vmem:[%s1] sm:$0xff]
    %v422 = vld [vmem:[#allocation2] sm:$0xff]
    %v423 = vld [vmem:[#allocation2 + $0x8] sm:$0xff]
    %v424 = vld [vmem:[#allocation2 + $0x10] sm:$0xff]
    %v425 = vld [vmem:[#allocation2 + $0x18] sm:$0xff]
    %v426 = vld [vmem:[#allocation2 + $0x20] sm:$0xff]
    %v427 = vld [vmem:[#allocation2 + $0x28] sm:$0xff]
    %v428 = vld [vmem:[#allocation2 + $0x30] sm:$0xff]
    %v429 = vld [vmem:[#allocation2 + $0x38] sm:$0xff]
    %v430 = vld [vmem:[#allocation2 + $0x40] sm:$0xff]
    %v431 = vld [vmem:[#allocation2 + $0x48] sm:$0xff]
    %v432 = vld [vmem:[#allocation2 + $0x50] sm:$0xff]
    %v433 = vld [vmem:[#allocation2 + $0x58] sm:$0xff]
    %v434 = vld [vmem:[#allocation2 + $0x60] sm:$0xff]
    %v435 = vld [vmem:[#allocation2 + $0x68] sm:$0xff]
    %v436 = vld [vmem:[#allocation2 + $0x70] sm:$0xff]
    %v437 = vld [vmem:[#allocation2 + $0x78] sm:$0xff]
    %v438 = vld [vmem:[#allocation2 + $0x80] sm:$0xf]
    %v439 = vld [vmem:[#allocation2 + $0x88] sm:$0xf]
    %v440 = vld [vmem:[#allocation2 + $0x90] sm:$0xf]
    %v441 = vld [vmem:[#allocation2 + $0x98] sm:$0xf]
    %v442 = vld [vmem:[%s2] sm:$0xff]
    %444 = vset.pattern.permute.xlu0 0
    %445 = vperm.xlu0 %444, %v442
    %v446 = vpop.permute.xlu0 %445
    %vm448 = vcmask 293888
    %v450 = vsel %vm448, %v421, 0
    %vm452 = vcmask 1043456
    %v454 = vsel %vm452, %v438, 0
    %v457 = vsel %vm452, %v439, 0
    %v460 = vsel %vm452, %v440, 0
    %v463 = vsel %vm452, %v441, 0
    %465 = vmatprep.subr.mxu0 0.0
    %466 = vmatpush1.msra.mxu0 0.0
    %467 = vmatprep.subr.mxu0 0.0
    %468 = vmatpush1.msra.mxu0 0.0
    %469 = vmatprep.subr.mxu0 0.0
    %470 = vmatpush1.msra.mxu0 0.0
    %471 = vmatprep.subr.mxu0 0.0
    %472 = vmatpush1.msra.mxu0 0.0
    %473 = vmatprep.subr.mxu0 0.0
    %474 = vmatpush1.msra.mxu0 0.0
    %475 = vmatprep.subr.mxu0 0.0
    %476 = vmatpush1.msra.mxu0 0.0
    %477 = vmatprep.subr.mxu0 0.0
    %478 = vmatpush1.msra.mxu0 0.0
    %479 = vmatprep.subr.mxu0 0.0
    %480 = vmatpush1.msra.mxu0 0.0
    %481 = vmatprep.subr.mxu0 0.0
    %482 = vmatpush1.msra.mxu0 0.0
    %483 = vmatprep.subr.mxu0 0.0
    %484 = vmatpush1.msra.mxu0 0.0
    %485 = vmatprep.subr.mxu0 0.0
    %486 = vmatpush1.msra.mxu0 0.0
    %487 = vmatprep.subr.mxu0 %v457
    %488 = vmatpush1.msra.mxu0 %v454
    %489 = vmatprep.subr.mxu0 %v435
    %490 = vmatpush1.msra.mxu0 %v434
    %491 = vmatprep.subr.mxu0 %v431
    %492 = vmatpush1.msra.mxu0 %v430
    %493 = vmatprep.subr.mxu0 %v427
    %494 = vmatpush1.msra.mxu0 %v426
    %495 = vmatprep.subr.mxu0 %v423
    %496 = vmatpush1.msra.mxu0 %v422
    %497 = vmatprep.subr.mxu0 0.0
    %498 = vmatpush2.msra.mxu0 0.0
    %499 = vmatprep.subr.mxu0 0.0
    %500 = vmatpush2.msra.mxu0 0.0
    %501 = vmatprep.subr.mxu0 0.0
    %502 = vmatpush2.msra.mxu0 0.0
    %503 = vmatprep.subr.mxu0 0.0
    %504 = vmatpush2.msra.mxu0 0.0
    %505 = vmatprep.subr.mxu0 0.0
    %506 = vmatpush2.msra.mxu0 0.0
    %507 = vmatprep.subr.mxu0 0.0
    %508 = vmatpush2.msra.mxu0 0.0
    %509 = vmatprep.subr.mxu0 0.0
    %510 = vmatpush2.msra.mxu0 0.0
    %511 = vmatprep.subr.mxu0 0.0
    %512 = vmatpush2.msra.mxu0 0.0
    %513 = vmatprep.subr.mxu0 0.0
    %514 = vmatpush2.msra.mxu0 0.0
    %515 = vmatprep.subr.mxu0 0.0
    %516 = vmatpush2.msra.mxu0 0.0
    %517 = vmatprep.subr.mxu0 0.0
    %518 = vmatpush2.msra.mxu0 0.0
    %519 = vmatprep.subr.mxu0 0.0
    %520 = vmatpush2.msra.mxu0 0.0
    %521 = vmatprep.subr.mxu0 0.0
    %522 = vmatpush2.msra.mxu0 0.0
    %523 = vmatprep.subr.mxu0 0.0
    %524 = vmatpush2.msra.mxu0 0.0
    %525 = vmatprep.subr.mxu0 0.0
    %526 = vmatpush2.msra.mxu0 0.0
    %527 = vmatprep.subr.mxu0 0.0
    %528 = vmatpush2.msra.mxu0 0.0
    %529 = vmatprep.mubr.f32.mxu0 0.0
    %530 = vmatmul.mubr.f32.gmra.mxu0 %v450
    %v531 = vpop.f32.mrf.mxu0
    %v532 = vadd.f32 %v446, %v531
    %v533 = vpop.f32.mrf.mxu0
    %v534 = vadd.f32 %v446, %v533
    %535 = vdwg.mxu0
    %536 = vmatprep.subr.mxu0 0.0
    %537 = vmatpush1.msra.mxu0 0.0
    %538 = vmatprep.subr.mxu0 0.0
    %539 = vmatpush1.msra.mxu0 0.0
    %540 = vmatprep.subr.mxu0 0.0
    %541 = vmatpush1.msra.mxu0 0.0
    %542 = vmatprep.subr.mxu0 0.0
    %543 = vmatpush1.msra.mxu0 0.0
    %544 = vmatprep.subr.mxu0 0.0
    %545 = vmatpush1.msra.mxu0 0.0
    %546 = vmatprep.subr.mxu0 0.0
    %547 = vmatpush1.msra.mxu0 0.0
    %548 = vmatprep.subr.mxu0 0.0
    %549 = vmatpush1.msra.mxu0 0.0
    %550 = vmatprep.subr.mxu0 0.0
    %551 = vmatpush1.msra.mxu0 0.0
    %552 = vmatprep.subr.mxu0 0.0
    %553 = vmatpush1.msra.mxu0 0.0
    %554 = vmatprep.subr.mxu0 0.0
    %555 = vmatpush1.msra.mxu0 0.0
    %556 = vmatprep.subr.mxu0 0.0
    %557 = vmatpush1.msra.mxu0 0.0
    %558 = vmatprep.subr.mxu0 %v463
    %559 = vmatpush1.msra.mxu0 %v460
    %560 = vmatprep.subr.mxu0 %v437
    %561 = vmatpush1.msra.mxu0 %v436
    %562 = vmatprep.subr.mxu0 %v433
    %563 = vmatpush1.msra.mxu0 %v432
    %564 = vmatprep.subr.mxu0 %v429
    %565 = vmatpush1.msra.mxu0 %v428
    %566 = vmatprep.subr.mxu0 %v425
    %567 = vmatpush1.msra.mxu0 %v424
    %568 = vmatprep.subr.mxu0 0.0
    %569 = vmatpush2.msra.mxu0 0.0
    %570 = vmatprep.subr.mxu0 0.0
    %571 = vmatpush2.msra.mxu0 0.0
    %572 = vmatprep.subr.mxu0 0.0
    %573 = vmatpush2.msra.mxu0 0.0
    %574 = vmatprep.subr.mxu0 0.0
    %575 = vmatpush2.msra.mxu0 0.0
    %576 = vmatprep.subr.mxu0 0.0
    %577 = vmatpush2.msra.mxu0 0.0
    %578 = vmatprep.subr.mxu0 0.0
    %579 = vmatpush2.msra.mxu0 0.0
    %580 = vmatprep.subr.mxu0 0.0
    %581 = vmatpush2.msra.mxu0 0.0
    %582 = vmatprep.subr.mxu0 0.0
    %583 = vmatpush2.msra.mxu0 0.0
    %584 = vmatprep.subr.mxu0 0.0
    %585 = vmatpush2.msra.mxu0 0.0
    %586 = vmatprep.subr.mxu0 0.0
    %587 = vmatpush2.msra.mxu0 0.0
    %588 = vmatprep.subr.mxu0 0.0
    %589 = vmatpush2.msra.mxu0 0.0
    %590 = vmatprep.subr.mxu0 0.0
    %591 = vmatpush2.msra.mxu0 0.0
    %592 = vmatprep.subr.mxu0 0.0
    %593 = vmatpush2.msra.mxu0 0.0
    %594 = vmatprep.subr.mxu0 0.0
    %595 = vmatpush2.msra.mxu0 0.0
    %596 = vmatprep.subr.mxu0 0.0
    %597 = vmatpush2.msra.mxu0 0.0
    %598 = vmatprep.subr.mxu0 0.0
    %599 = vmatpush2.msra.mxu0 0.0
    %600 = vmatprep.mubr.f32.mxu0 0.0
    %601 = vmatmul.mubr.f32.gmra.mxu0 %v450
    %v602 = vpop.f32.mrf.mxu0
    %v603 = vadd.f32 %v446, %v602
    %v604 = vpop.f32.mrf.mxu0
    %v605 = vadd.f32 %v446, %v604
    %606 = vdwg.mxu0
    %607 = vst [vmem:[#allocation6] sm:$0xff] %v532
    %608 = vst [vmem:[#allocation6 + $0x8] sm:$0xff] %v534
    %s609 = scalar_lea.vmem [#allocation6], 16
    %610 = vst [vmem:[%s609] sm:$0xff] %v603
    %611 = vst [vmem:[%s609 + $0x8] sm:$0xff] %v605
    // Predicated region
    $region18: #{tpu_custom_call.1} parent=1 // pred_check
      _
    $region19: #{tpu_custom_call.1} parent=1 // pred_check_branch
      %613 = sbr.rel (0) target = $region21
    $region20: #{tpu_custom_call.1} parent=1 // pred_region
      %s615 = ssub.s32 512, 512
      %616 = vsyncadd [#allocation5], %s615
      %s617 = sshll.u32 [#allocation6], 4
      %s618 = int_to_ptr.vmem [resolvable:$true] %s617
      %623 = dma.vmem_to_hbm [thread:$0]  %s618, 512, %s3, [#allocation5], 256, 256, 16
    $region21: #{tpu_custom_call.1} parent=1 // pred_fallthru
      _
    // Predicated region
    $region22: #{tpu_custom_call.1} parent=1 // pred_check
      _
    $region23: #{tpu_custom_call.1} parent=1 // pred_check_branch
      %625 = sbr.rel (0) target = $region25
    $region24: #{tpu_custom_call.1} parent=1 // pred_region
      %626 = dma.done [#allocation5], 512
    $region25: #{tpu_custom_call.1} parent=1 // pred_fallthru
      _
    %627 = vsyncpa [#allocation4], 1
    %628 = vsyncpa [#allocation5], 1

</llo_original>
